<compile_context>
chip_gen: v5e
topology: v5e:2x2
jax: 0.10.0
libtpu: 0.0.40
codegen_flags: <defaults>
</compile_context>

<pallas_src>
import math

import jax
import jax.numpy as jnp
from jax.experimental import pallas as pl
from jax.experimental.pallas import tpu as pltpu

# ---- model config (small, consistent with the module) ----
B = 2            # batch
S = 8            # sequence length
H = 32           # hidden size
NUM_HEADS = 4
HEAD_DIM = H // NUM_HEADS
LN_EPS = 1e-12

BH = B * NUM_HEADS          # fused batch*heads axis used inside the kernel
D3 = 3 * HEAD_DIM           # packed per-head Q|K|V output width


def roberta_attention_kernel(
    x_ref,        # (B, S, H)        hidden_states (residual path)
    x_bh_ref,     # (BH, S, H)       hidden_states broadcast over heads
    bias_ref,     # (BH, 1, S)       additive mask bias  -1000*(1-mask)
    wqkv_ref,     # (BH, H, 3*HD)    packed, pre-transposed per-head QKV weights
    bqkv_ref,     # (BH, 1, 3*HD)    packed per-head QKV biases
    wo_ref,       # (BH, HD, H)      per-head slice of output projection (in,out)
    bo_ref,       # (1, 1, H)
    gamma_ref,    # (1, 1, H)
    beta_ref,     # (1, 1, H)
    out_ref,      # (B, S, H)
):
    f32 = jnp.float32
    x_bh = x_bh_ref[...].astype(f32)                               # (BH, S, H)

    # Fused QKV projection: one batched matmul, no runtime weight transpose.
    qkv = jnp.einsum(
        "ash,ahd->asd", x_bh, wqkv_ref[...].astype(f32),
        preferred_element_type=f32,
    ) + bqkv_ref[...]                                              # (BH, S, 3*HD)

    q = qkv[:, :, :HEAD_DIM]                                       # (BH, S, HD)
    k = qkv[:, :, HEAD_DIM:2 * HEAD_DIM]
    v = qkv[:, :, 2 * HEAD_DIM:]

    # 1/sqrt(head_dim) is pre-folded into the Q weights/bias in the wrapper.
    scores = jnp.einsum("aqd,akd->aqk", q, k,
                        preferred_element_type=f32)                # (BH, S, S)
    scores = scores + bias_ref[...]                                # mask bias

    # Softmax with the divide deferred past the P@V matmul.
    m = jnp.max(scores, axis=-1, keepdims=True)                    # (BH, S, 1)
    e = jnp.exp(scores - m)                                        # (BH, S, S)
    ssum = jnp.sum(e, axis=-1, keepdims=True)                      # (BH, S, 1)
    ctx = jnp.einsum("aqk,akd->aqd", e, v,
                     preferred_element_type=f32)                   # (BH, S, HD)
    ctx = ctx * pl.reciprocal(ssum, approx=True)

    # Output projection done per head and summed over heads -> merges heads
    # back to (B, S, H) without any in-kernel transpose / lane concat.
    partial = jnp.einsum("asd,adh->ash", ctx, wo_ref[...].astype(f32),
                         preferred_element_type=f32)               # (BH, S, H)
    partial = partial.reshape(B, NUM_HEADS, S, H)                  # leading-dim split
    dense = partial[:, 0, :, :]
    for n in range(1, NUM_HEADS):
        dense = dense + partial[:, n, :, :]                        # (B, S, H)

    # RobertaSelfOutput: dense -> (dropout: identity) -> LayerNorm(x + resid)
    resid = dense + bo_ref[...] + x_ref[...].astype(f32)           # (B, S, H)
    mean = jnp.mean(resid, axis=-1, keepdims=True)
    cen = resid - mean
    var = jnp.mean(cen * cen, axis=-1, keepdims=True)
    y = cen * jax.lax.rsqrt(var + LN_EPS) * gamma_ref[...] + beta_ref[...]

    out_ref[...] = y.astype(out_ref.dtype)


def roberta_attention(x, mask, params):
    """x: (B, S, H) float32, mask: (B, S) float32 (1.0 = keep)."""
    wq, bq, wk, bk, wv, bv, wo, bo, gamma, beta = params

    scale = 1.0 / math.sqrt(HEAD_DIM)
    wq_s = wq * scale                    # fold attention scale into Q proj
    bq_s = bq * scale

    # --- one-time parameter packing (all done in the wrapper, not the kernel) ---
    def w_heads(w):   # nn.Linear weight (out,in) -> (NH, in=H, HD), pre-transposed
        return w.T.reshape(H, NUM_HEADS, HEAD_DIM).transpose(1, 0, 2)

    def b_heads(b):   # (1, H) -> (NH, 1, HD)
        return b.reshape(NUM_HEADS, HEAD_DIM)[:, None, :]

    w_qkv = jnp.concatenate([w_heads(wq_s), w_heads(wk), w_heads(wv)], axis=-1)  # (NH,H,3HD)
    b_qkv = jnp.concatenate([b_heads(bq_s), b_heads(bk), b_heads(bv)], axis=-1)  # (NH,1,3HD)
    w_qkv_bh = jnp.broadcast_to(w_qkv[None], (B, NUM_HEADS, H, D3)).reshape(BH, H, D3)
    b_qkv_bh = jnp.broadcast_to(b_qkv[None], (B, NUM_HEADS, 1, D3)).reshape(BH, 1, D3)

    wo_h = wo.T.reshape(NUM_HEADS, HEAD_DIM, H)                                  # (NH,HD,H)
    wo_bh = jnp.broadcast_to(wo_h[None], (B, NUM_HEADS, HEAD_DIM, H)).reshape(BH, HEAD_DIM, H)

    # hidden_states broadcast over heads (fused B*NUM_HEADS batch axis).
    x_bh = jnp.broadcast_to(x[:, None], (B, NUM_HEADS, S, H)).reshape(BH, S, H)

    # additive mask bias, exactly as the module: -1000 * (1 - mask)
    bias = (-1000.0 * (1.0 - mask)).astype(jnp.float32)                          # (B, S)
    bias_bh = jnp.broadcast_to(bias[:, None, None, :],
                               (B, NUM_HEADS, 1, S)).reshape(BH, 1, S)

    bo3 = bo.reshape(1, 1, H)
    gamma3 = gamma.reshape(1, 1, H)
    beta3 = beta.reshape(1, 1, H)

    vmem = lambda: pl.BlockSpec(memory_space=pltpu.MemorySpace.VMEM)

    return pl.pallas_call(
        roberta_attention_kernel,
        out_shape=jax.ShapeDtypeStruct((B, S, H), x.dtype),
        in_specs=[vmem() for _ in range(9)],   # whole (tiny) arrays resident in VMEM
        out_specs=vmem(),
    )(x, x_bh, bias_bh, w_qkv_bh, b_qkv_bh, wo_bh, bo3, gamma3, beta3)


# ---- plain-JAX reference (correctness sanity check) ----
def reference(x, mask, params):
    wq, bq, wk, bk, wv, bv, wo, bo, gamma, beta = params
    q = x @ wq.T + bq
    k = x @ wk.T + bk
    v = x @ wv.T + bv

    def split(t):  # (B,S,H) -> (B,nH,S,d)
        return t.reshape(B, S, NUM_HEADS, HEAD_DIM).transpose(0, 2, 1, 3)

    qh, kh, vh = split(q), split(k), split(v)
    scores = jnp.einsum("bhqd,bhkd->bhqk", qh, kh) / math.sqrt(HEAD_DIM)
    bias = -1000.0 * (1.0 - mask)[:, None, None, :]
    probs = jax.nn.softmax(scores + bias, axis=-1)
    ctx = jnp.einsum("bhqk,bhkd->bhqd", probs, vh)
    ctx = ctx.transpose(0, 2, 1, 3).reshape(B, S, H)

    dense = ctx @ wo.T + bo
    resid = dense + x
    mean = resid.mean(-1, keepdims=True)
    var = ((resid - mean) ** 2).mean(-1, keepdims=True)
    return (resid - mean) * jax.lax.rsqrt(var + LN_EPS) * gamma + beta


def init_params(key):
    ks = jax.random.split(key, 8)
    std = 0.02
    wq = std * jax.random.normal(ks[0], (H, H), jnp.float32)
    wk = std * jax.random.normal(ks[1], (H, H), jnp.float32)
    wv = std * jax.random.normal(ks[2], (H, H), jnp.float32)
    wo = std * jax.random.normal(ks[3], (H, H), jnp.float32)
    bq = jnp.zeros((1, H), jnp.float32)
    bk = 0.01 * jax.random.normal(ks[4], (1, H), jnp.float32)
    bv = 0.01 * jax.random.normal(ks[5], (1, H), jnp.float32)
    bo = 0.01 * jax.random.normal(ks[6], (1, H), jnp.float32)
    gamma = jnp.ones((1, H), jnp.float32)
    beta = jnp.zeros((1, H), jnp.float32)
    return (wq, bq, wk, bk, wv, bv, wo, bo, gamma, beta)


if __name__ == "__main__":
    key = jax.random.PRNGKey(0)
    kx, kp = jax.random.split(key)

    x = jax.random.normal(kx, (B, S, H), jnp.float32)
    # example padding mask: batch 0 attends to all 8 tokens, batch 1 to first 6
    lengths = jnp.array([8, 6])
    mask = (jnp.arange(S)[None, :] < lengths[:, None]).astype(jnp.float32)

    params = init_params(kp)

    out = roberta_attention(x, mask, params)
    out = jax.block_until_ready(out)

    ref = reference(x, mask, params)
    # slightly loose tolerance to accommodate the approximate EUP reciprocal
    assert jnp.allclose(out, ref, rtol=2e-3, atol=2e-3), "Pallas output mismatch"

    print("KERNEL_OK")
</pallas_src>

<mosaic_0001>
module attributes {stable_mosaic.version = 11 : i64} {
  func.func @roberta_attention_kernel(%arg0: memref<2x8x32xf32, #tpu.memory_space<vmem>>, %arg1: memref<8x8x32xf32, #tpu.memory_space<vmem>>, %arg2: memref<8x1x8xf32, #tpu.memory_space<vmem>>, %arg3: memref<8x32x24xf32, #tpu.memory_space<vmem>>, %arg4: memref<8x1x24xf32, #tpu.memory_space<vmem>>, %arg5: memref<8x8x32xf32, #tpu.memory_space<vmem>>, %arg6: memref<1x1x32xf32, #tpu.memory_space<vmem>>, %arg7: memref<1x1x32xf32, #tpu.memory_space<vmem>>, %arg8: memref<1x1x32xf32, #tpu.memory_space<vmem>>, %arg9: memref<2x8x32xf32, #tpu.memory_space<vmem>>) attributes {dimension_semantics = [], scalar_prefetch = 0 : i64, scratch_operands = 0 : i64, tpu.core_type = #tpu.core_type<tc>} {
    %c0 = arith.constant 0 : index
    %c0_0 = arith.constant 0 : index
    %c0_1 = arith.constant 0 : index
    %0 = vector.load %arg1[%c0, %c0_0, %c0_1] : memref<8x8x32xf32, #tpu.memory_space<vmem>>, vector<8x8x32xf32>
    %c0_2 = arith.constant 0 : index
    %c0_3 = arith.constant 0 : index
    %c0_4 = arith.constant 0 : index
    %1 = vector.load %arg3[%c0_2, %c0_3, %c0_4] : memref<8x32x24xf32, #tpu.memory_space<vmem>>, vector<8x32x24xf32>
    "tpu.trace_start"() <{level = 10 : i32, message = "ash,ahd->asd"}> : () -> ()
    %cst = arith.constant dense<0.000000e+00> : vector<8x8x24xf32>
    %2 = tpu.matmul %0, %1, %cst {dimension_numbers = #tpu.dot_dimension_numbers<[2], [1], [1], [2], [0, 0, 0, 1, 1, 2], [0], [0]>} : vector<8x8x32xf32>, vector<8x32x24xf32>, vector<8x8x24xf32> -> vector<8x8x24xf32>
    "tpu.trace_stop"() : () -> ()
    %c0_5 = arith.constant 0 : index
    %c0_6 = arith.constant 0 : index
    %c0_7 = arith.constant 0 : index
    %3 = vector.load %arg4[%c0_5, %c0_6, %c0_7] : memref<8x1x24xf32, #tpu.memory_space<vmem>>, vector<8x1x24xf32>
    %4 = vector.broadcast %3 : vector<8x1x24xf32> to vector<8x8x24xf32>
    %5 = arith.addf %2, %4 : vector<8x8x24xf32>
    %6 = vector.extract_strided_slice %5 {offsets = [0, 0, 0], sizes = [8, 8, 8], strides = [1, 1, 1]} : vector<8x8x24xf32> to vector<8x8x8xf32>
    %7 = vector.extract_strided_slice %5 {offsets = [0, 0, 8], sizes = [8, 8, 8], strides = [1, 1, 1]} : vector<8x8x24xf32> to vector<8x8x8xf32>
    %8 = vector.extract_strided_slice %5 {offsets = [0, 0, 16], sizes = [8, 8, 8], strides = [1, 1, 1]} : vector<8x8x24xf32> to vector<8x8x8xf32>
    "tpu.trace_start"() <{level = 10 : i32, message = "aqd,akd->aqk"}> : () -> ()
    %cst_8 = arith.constant dense<0.000000e+00> : vector<8x8x8xf32>
    %9 = tpu.matmul %6, %7, %cst_8 {dimension_numbers = #tpu.dot_dimension_numbers<[2], [2], [1], [1], [0, 0, 0, 1, 1, 1], [0], [0]>} : vector<8x8x8xf32>, vector<8x8x8xf32>, vector<8x8x8xf32> -> vector<8x8x8xf32>
    "tpu.trace_stop"() : () -> ()
    %c0_9 = arith.constant 0 : index
    %c0_10 = arith.constant 0 : index
    %c0_11 = arith.constant 0 : index
    %10 = vector.load %arg2[%c0_9, %c0_10, %c0_11] : memref<8x1x8xf32, #tpu.memory_space<vmem>>, vector<8x1x8xf32>
    %11 = vector.broadcast %10 : vector<8x1x8xf32> to vector<8x8x8xf32>
    %12 = arith.addf %9, %11 : vector<8x8x8xf32>
    %cst_12 = arith.constant dense<0xFF800000> : vector<8x8xf32>
    %13 = vector.multi_reduction <maximumf>, %12, %cst_12 [2] : vector<8x8x8xf32> to vector<8x8xf32>
    %14 = vector.shape_cast %13 : vector<8x8xf32> to vector<8x8x1xf32>
    %15 = vector.broadcast %14 : vector<8x8x1xf32> to vector<8x8x8xf32>
    %16 = arith.subf %12, %15 : vector<8x8x8xf32>
    %17 = math.exp %16 : vector<8x8x8xf32>
    %cst_13 = arith.constant dense<0.000000e+00> : vector<8x8xf32>
    %18 = vector.multi_reduction <add>, %17, %cst_13 [2] : vector<8x8x8xf32> to vector<8x8xf32>
    %19 = vector.shape_cast %18 : vector<8x8xf32> to vector<8x8x1xf32>
    "tpu.trace_start"() <{level = 10 : i32, message = "aqk,akd->aqd"}> : () -> ()
    %cst_14 = arith.constant dense<0.000000e+00> : vector<8x8x8xf32>
    %20 = tpu.matmul %17, %8, %cst_14 {dimension_numbers = #tpu.dot_dimension_numbers<[2], [1], [1], [2], [0, 0, 0, 1, 1, 2], [0], [0]>} : vector<8x8x8xf32>, vector<8x8x8xf32>, vector<8x8x8xf32> -> vector<8x8x8xf32>
    "tpu.trace_stop"() : () -> ()
    %21 = tpu.reciprocal %19 {approx = true} : vector<8x8x1xf32> -> vector<8x8x1xf32>
    %22 = vector.broadcast %21 : vector<8x8x1xf32> to vector<8x8x8xf32>
    %23 = arith.mulf %20, %22 : vector<8x8x8xf32>
    %c0_15 = arith.constant 0 : index
    %c0_16 = arith.constant 0 : index
    %c0_17 = arith.constant 0 : index
    %24 = vector.load %arg5[%c0_15, %c0_16, %c0_17] : memref<8x8x32xf32, #tpu.memory_space<vmem>>, vector<8x8x32xf32>
    "tpu.trace_start"() <{level = 10 : i32, message = "asd,adh->ash"}> : () -> ()
    %cst_18 = arith.constant dense<0.000000e+00> : vector<8x8x32xf32>
    %25 = tpu.matmul %23, %24, %cst_18 {dimension_numbers = #tpu.dot_dimension_numbers<[2], [1], [1], [2], [0, 0, 0, 1, 1, 2], [0], [0]>} : vector<8x8x8xf32>, vector<8x8x32xf32>, vector<8x8x32xf32> -> vector<8x8x32xf32>
    "tpu.trace_stop"() : () -> ()
    %26 = vector.shape_cast %25 : vector<8x8x32xf32> to vector<2x4x8x32xf32>
    %27 = vector.extract_strided_slice %26 {offsets = [0, 0, 0, 0], sizes = [2, 1, 8, 32], strides = [1, 1, 1, 1]} : vector<2x4x8x32xf32> to vector<2x1x8x32xf32>
    %28 = vector.shape_cast %27 : vector<2x1x8x32xf32> to vector<2x8x32xf32>
    %29 = vector.extract_strided_slice %26 {offsets = [0, 1, 0, 0], sizes = [2, 1, 8, 32], strides = [1, 1, 1, 1]} : vector<2x4x8x32xf32> to vector<2x1x8x32xf32>
    %30 = vector.shape_cast %29 : vector<2x1x8x32xf32> to vector<2x8x32xf32>
    %31 = arith.addf %28, %30 : vector<2x8x32xf32>
    %32 = vector.extract_strided_slice %26 {offsets = [0, 2, 0, 0], sizes = [2, 1, 8, 32], strides = [1, 1, 1, 1]} : vector<2x4x8x32xf32> to vector<2x1x8x32xf32>
    %33 = vector.shape_cast %32 : vector<2x1x8x32xf32> to vector<2x8x32xf32>
    %34 = arith.addf %31, %33 : vector<2x8x32xf32>
    %35 = vector.extract_strided_slice %26 {offsets = [0, 3, 0, 0], sizes = [2, 1, 8, 32], strides = [1, 1, 1, 1]} : vector<2x4x8x32xf32> to vector<2x1x8x32xf32>
    %36 = vector.shape_cast %35 : vector<2x1x8x32xf32> to vector<2x8x32xf32>
    %37 = arith.addf %34, %36 : vector<2x8x32xf32>
    %c0_19 = arith.constant 0 : index
    %c0_20 = arith.constant 0 : index
    %c0_21 = arith.constant 0 : index
    %38 = vector.load %arg6[%c0_19, %c0_20, %c0_21] : memref<1x1x32xf32, #tpu.memory_space<vmem>>, vector<1x1x32xf32>
    %39 = vector.broadcast %38 : vector<1x1x32xf32> to vector<2x8x32xf32>
    %40 = arith.addf %37, %39 : vector<2x8x32xf32>
    %c0_22 = arith.constant 0 : index
    %c0_23 = arith.constant 0 : index
    %c0_24 = arith.constant 0 : index
    %41 = vector.load %arg0[%c0_22, %c0_23, %c0_24] : memref<2x8x32xf32, #tpu.memory_space<vmem>>, vector<2x8x32xf32>
    %42 = arith.addf %40, %41 : vector<2x8x32xf32>
    %cst_25 = arith.constant dense<0.000000e+00> : vector<2x8xf32>
    %43 = vector.multi_reduction <add>, %42, %cst_25 [2] : vector<2x8x32xf32> to vector<2x8xf32>
    %44 = vector.shape_cast %43 : vector<2x8xf32> to vector<2x8x1xf32>
    %cst_26 = arith.constant 3.200000e+01 : f32
    %45 = vector.broadcast %cst_26 : f32 to vector<2x8x1xf32>
    %46 = arith.divf %44, %45 : vector<2x8x1xf32>
    %47 = vector.broadcast %46 : vector<2x8x1xf32> to vector<2x8x32xf32>
    %48 = arith.subf %42, %47 : vector<2x8x32xf32>
    %49 = arith.mulf %48, %48 : vector<2x8x32xf32>
    %cst_27 = arith.constant dense<0.000000e+00> : vector<2x8xf32>
    %50 = vector.multi_reduction <add>, %49, %cst_27 [2] : vector<2x8x32xf32> to vector<2x8xf32>
    %51 = vector.shape_cast %50 : vector<2x8xf32> to vector<2x8x1xf32>
    %cst_28 = arith.constant 3.200000e+01 : f32
    %52 = vector.broadcast %cst_28 : f32 to vector<2x8x1xf32>
    %53 = arith.divf %51, %52 : vector<2x8x1xf32>
    %cst_29 = arith.constant 9.99999996E-13 : f32
    %54 = vector.broadcast %cst_29 : f32 to vector<2x8x1xf32>
    %55 = arith.addf %53, %54 : vector<2x8x1xf32>
    %56 = math.rsqrt %55 : vector<2x8x1xf32>
    %57 = vector.broadcast %56 : vector<2x8x1xf32> to vector<2x8x32xf32>
    %58 = arith.mulf %48, %57 : vector<2x8x32xf32>
    %c0_30 = arith.constant 0 : index
    %c0_31 = arith.constant 0 : index
    %c0_32 = arith.constant 0 : index
    %59 = vector.load %arg7[%c0_30, %c0_31, %c0_32] : memref<1x1x32xf32, #tpu.memory_space<vmem>>, vector<1x1x32xf32>
    %60 = vector.broadcast %59 : vector<1x1x32xf32> to vector<2x8x32xf32>
    %61 = arith.mulf %58, %60 : vector<2x8x32xf32>
    %c0_33 = arith.constant 0 : index
    %c0_34 = arith.constant 0 : index
    %c0_35 = arith.constant 0 : index
    %62 = vector.load %arg8[%c0_33, %c0_34, %c0_35] : memref<1x1x32xf32, #tpu.memory_space<vmem>>, vector<1x1x32xf32>
    %63 = vector.broadcast %62 : vector<1x1x32xf32> to vector<2x8x32xf32>
    %64 = arith.addf %61, %63 : vector<2x8x32xf32>
    %c0_36 = arith.constant 0 : index
    %c0_37 = arith.constant 0 : index
    %c0_38 = arith.constant 0 : index
    %65 = vector.load %arg9[%c0_36, %c0_37, %c0_38] : memref<2x8x32xf32, #tpu.memory_space<vmem>>, vector<2x8x32xf32>
    tpu.vector_store %arg9[%c0_36, %c0_37, %c0_38], %64 {strides = array<i32>} : memref<2x8x32xf32, #tpu.memory_space<vmem>>, vector<2x8x32xf32>,
    return
  }
}

</mosaic_0001>

<llo_original>
// kernel: tpu_custom_call.1
$region0: #{tpu_custom_call.1}
  #allocation0 [shape = 'u32[]', space=smem, size = 0x4, offset = 0x4, fixed_abs, tag = 'smem constant byte address 0x4 - core index']
  #allocation1 [shape = 'u32[72,128]{1,0:T(1,128)}', space=vmem, size = 0x9000, scoped, tag = 'internal scratch']
  %s0 = inlined_call_operand.vmem [shape: f32[2,8,32], index: 0, kind: input, shape index: {}]
  %s1 = inlined_call_operand.vmem [shape: f32[8,8,32], index: 1, kind: input, shape index: {}]
  %s2 = inlined_call_operand.vmem [shape: f32[8,1,8], index: 2, kind: input, shape index: {}]
  %s3 = inlined_call_operand.vmem [shape: f32[8,32,24], index: 3, kind: input, shape index: {}]
  %s4 = inlined_call_operand.vmem [shape: f32[8,1,24], index: 4, kind: input, shape index: {}]
  %s5 = inlined_call_operand.vmem [shape: f32[8,8,32], index: 5, kind: input, shape index: {}]
  %s6 = inlined_call_operand.vmem [shape: f32[1,1,32], index: 6, kind: input, shape index: {}]
  %s7 = inlined_call_operand.vmem [shape: f32[1,1,32], index: 7, kind: input, shape index: {}]
  %s8 = inlined_call_operand.vmem [shape: f32[1,1,32], index: 8, kind: input, shape index: {}]
  %s9 = inlined_call_operand.hbm [shape: f32[2,8,32], index: 9, kind: output, shape index: {}]
  %s10 = sld [smem:[#allocation0]]
  $region46: #{tpu_custom_call.1} parent=0
    _
  %s12 = ssub.s32 1, %s10
  %s13 = scalar_select 0, %s12, %s10
  $region1: #{tpu_custom_call.1} parent=0
    #allocation2 [shape = 'u8[8192]{0}', space=vmem, size = 0x2000, scoped, tag = 'output window, operand 0, single buffered']
    #allocation3 [shape = 's32[1]{0}', space=sflag, size = 0x4, scoped, tag = 'scoped memory for tpu_custom_call.1']
    %14 = vsyncpa [#allocation3], 0
    // Predicated region
    $region2: #{tpu_custom_call.1} parent=1 // pred_check
      _
    $region3: #{tpu_custom_call.1} parent=1 // pred_check_branch
      %16 = sbr.rel (0) target = $region5
    $region4: #{tpu_custom_call.1} parent=1 // pred_region
      _
    $region5: #{tpu_custom_call.1} parent=1 // pred_fallthru
      _
    // Predicated region
    $region6: #{tpu_custom_call.1} parent=1 // pred_check
      _
    $region7: #{tpu_custom_call.1} parent=1 // pred_check_branch
      %18 = sbr.rel (0) target = $region9
    $region8: #{tpu_custom_call.1} parent=1 // pred_region
      _
    $region9: #{tpu_custom_call.1} parent=1 // pred_fallthru
      _
    // Predicated region
    $region10: #{tpu_custom_call.1} parent=1 // pred_check
      _
    $region11: #{tpu_custom_call.1} parent=1 // pred_check_branch
      %20 = sbr.rel (0) target = $region13
    $region12: #{tpu_custom_call.1} parent=1 // pred_region
      _
    $region13: #{tpu_custom_call.1} parent=1 // pred_fallthru
      _
    // Predicated region
    $region14: #{tpu_custom_call.1} parent=1 // pred_check
      _
    $region15: #{tpu_custom_call.1} parent=1 // pred_check_branch
      %22 = sbr.rel (0) target = $region17
    $region16: #{tpu_custom_call.1} parent=1 // pred_region
      _
    $region17: #{tpu_custom_call.1} parent=1 // pred_fallthru
      _
    // Predicated region
    $region18: #{tpu_custom_call.1} parent=1 // pred_check
      _
    $region19: #{tpu_custom_call.1} parent=1 // pred_check_branch
      %24 = sbr.rel (0) target = $region21
    $region20: #{tpu_custom_call.1} parent=1 // pred_region
      _
    $region21: #{tpu_custom_call.1} parent=1 // pred_fallthru
      _
    // Predicated region
    $region22: #{tpu_custom_call.1} parent=1 // pred_check
      _
    $region23: #{tpu_custom_call.1} parent=1 // pred_check_branch
      %26 = sbr.rel (0) target = $region25
    $region24: #{tpu_custom_call.1} parent=1 // pred_region
      _
    $region25: #{tpu_custom_call.1} parent=1 // pred_fallthru
      _
    // Predicated region
    $region26: #{tpu_custom_call.1} parent=1 // pred_check
      _
    $region27: #{tpu_custom_call.1} parent=1 // pred_check_branch
      %28 = sbr.rel (0) target = $region29
    $region28: #{tpu_custom_call.1} parent=1 // pred_region
      _
    $region29: #{tpu_custom_call.1} parent=1 // pred_fallthru
      _
    // Predicated region
    $region30: #{tpu_custom_call.1} parent=1 // pred_check
      _
    $region31: #{tpu_custom_call.1} parent=1 // pred_check_branch
      %30 = sbr.rel (0) target = $region33
    $region32: #{tpu_custom_call.1} parent=1 // pred_region
      _
    $region33: #{tpu_custom_call.1} parent=1 // pred_fallthru
      _
    // Predicated region
    $region34: #{tpu_custom_call.1} parent=1 // pred_check
      _
    $region35: #{tpu_custom_call.1} parent=1 // pred_check_branch
      %32 = sbr.rel (0) target = $region37
    $region36: #{tpu_custom_call.1} parent=1 // pred_region
      _
    $region37: #{tpu_custom_call.1} parent=1 // pred_fallthru
      _
    %v33 = vld [vmem:[%s1] sm:$0xff]
    %v34 = vld [vmem:[%s1 + $0x8] sm:$0xff]
    %v35 = vld [vmem:[%s1 + $0x10] sm:$0xff]
    %v36 = vld [vmem:[%s1 + $0x18] sm:$0xff]
    %v37 = vld [vmem:[%s1 + $0x20] sm:$0xff]
    %v38 = vld [vmem:[%s1 + $0x28] sm:$0xff]
    %v39 = vld [vmem:[%s1 + $0x30] sm:$0xff]
    %v40 = vld [vmem:[%s1 + $0x38] sm:$0xff]
    %v41 = vld [vmem:[%s3] sm:$0xff]
    %v42 = vld [vmem:[%s3 + $0x8] sm:$0xff]
    %v43 = vld [vmem:[%s3 + $0x10] sm:$0xff]
    %v44 = vld [vmem:[%s3 + $0x18] sm:$0xff]
    %v45 = vld [vmem:[%s3 + $0x20] sm:$0xff]
    %v46 = vld [vmem:[%s3 + $0x28] sm:$0xff]
    %v47 = vld [vmem:[%s3 + $0x30] sm:$0xff]
    %v48 = vld [vmem:[%s3 + $0x38] sm:$0xff]
    %v49 = vld [vmem:[%s3 + $0x40] sm:$0xff]
    %v50 = vld [vmem:[%s3 + $0x48] sm:$0xff]
    %v51 = vld [vmem:[%s3 + $0x50] sm:$0xff]
    %v52 = vld [vmem:[%s3 + $0x58] sm:$0xff]
    %v53 = vld [vmem:[%s3 + $0x60] sm:$0xff]
    %v54 = vld [vmem:[%s3 + $0x68] sm:$0xff]
    %v55 = vld [vmem:[%s3 + $0x70] sm:$0xff]
    %v56 = vld [vmem:[%s3 + $0x78] sm:$0xff]
    %v57 = vld [vmem:[%s3 + $0x80] sm:$0xff]
    %v58 = vld [vmem:[%s3 + $0x88] sm:$0xff]
    %v59 = vld [vmem:[%s3 + $0x90] sm:$0xff]
    %v60 = vld [vmem:[%s3 + $0x98] sm:$0xff]
    %v61 = vld [vmem:[%s3 + $0xa0] sm:$0xff]
    %v62 = vld [vmem:[%s3 + $0xa8] sm:$0xff]
    %v63 = vld [vmem:[%s3 + $0xb0] sm:$0xff]
    %v64 = vld [vmem:[%s3 + $0xb8] sm:$0xff]
    %v65 = vld [vmem:[%s3 + $0xc0] sm:$0xff]
    %v66 = vld [vmem:[%s3 + $0xc8] sm:$0xff]
    %v67 = vld [vmem:[%s3 + $0xd0] sm:$0xff]
    %v68 = vld [vmem:[%s3 + $0xd8] sm:$0xff]
    %v69 = vld [vmem:[%s3 + $0xe0] sm:$0xff]
    %v70 = vld [vmem:[%s3 + $0xe8] sm:$0xff]
    %v71 = vld [vmem:[%s3 + $0xf0] sm:$0xff]
    %v72 = vld [vmem:[%s3 + $0xf8] sm:$0xff]
    %v73 = vld [vmem:[%s4] sm:$0x1]
    %v74 = vld [vmem:[%s4 + $0x1] sm:$0x1]
    %v75 = vld [vmem:[%s4 + $0x2] sm:$0x1]
    %v76 = vld [vmem:[%s4 + $0x3] sm:$0x1]
    %v77 = vld [vmem:[%s4 + $0x4] sm:$0x1]
    %v78 = vld [vmem:[%s4 + $0x5] sm:$0x1]
    %v79 = vld [vmem:[%s4 + $0x6] sm:$0x1]
    %v80 = vld [vmem:[%s4 + $0x7] sm:$0x1]
    %v89 = vperm.slane %v73, 0
    %v90 = vperm.slane %v74, 0
    %v91 = vperm.slane %v75, 0
    %v92 = vperm.slane %v76, 0
    %v93 = vperm.slane %v77, 0
    %v94 = vperm.slane %v78, 0
    %v95 = vperm.slane %v79, 0
    %v96 = vperm.slane %v80, 0
    %vm105 = vcmask 261120
    %v107 = vsel %vm105, %v33, 0
    %109 = vmatpush.msra.mxu0 0.0
    %110 = vmatpush.msra.mxu0 0.0
    %111 = vmatpush.msra.mxu0 0.0
    %112 = vmatpush.msra.mxu0 0.0
    %113 = vmatpush.msra.mxu0 0.0
    %114 = vmatpush.msra.mxu0 0.0
    %115 = vmatpush.msra.mxu0 0.0
    %116 = vmatpush.msra.mxu0 0.0
    %117 = vmatpush.msra.mxu0 0.0
    %118 = vmatpush.msra.mxu0 0.0
    %119 = vmatpush.msra.mxu0 0.0
    %120 = vmatpush.msra.mxu0 0.0
    %121 = vmatpush.msra.mxu0 %v44
    %122 = vmatpush.msra.mxu0 %v43
    %123 = vmatpush.msra.mxu0 %v42
    %124 = vmatpush.msra.mxu0 %v41
    %125 = vmatmul.f32.gmra.mxu0 %v107
    %v126 = vpop.f32.mrf.mxu0
    %v127 = vadd.f32 %v89, %v126
    %128 = vdwg.mxu0
    %v130 = vsel %vm105, %v34, 0
    %132 = vmatpush.msra.mxu0 0.0
    %133 = vmatpush.msra.mxu0 0.0
    %134 = vmatpush.msra.mxu0 0.0
    %135 = vmatpush.msra.mxu0 0.0
    %136 = vmatpush.msra.mxu0 0.0
    %137 = vmatpush.msra.mxu0 0.0
    %138 = vmatpush.msra.mxu0 0.0
    %139 = vmatpush.msra.mxu0 0.0
    %140 = vmatpush.msra.mxu0 0.0
    %141 = vmatpush.msra.mxu0 0.0
    %142 = vmatpush.msra.mxu0 0.0
    %143 = vmatpush.msra.mxu0 0.0
    %144 = vmatpush.msra.mxu0 %v48
    %145 = vmatpush.msra.mxu0 %v47
    %146 = vmatpush.msra.mxu0 %v46
    %147 = vmatpush.msra.mxu0 %v45
    %148 = vmatmul.f32.gmra.mxu0 %v130
    %v149 = vpop.f32.mrf.mxu0
    %v150 = vadd.f32 %v90, %v149
    %151 = vdwg.mxu0
    %v153 = vsel %vm105, %v35, 0
    %155 = vmatpush.msra.mxu0 0.0
    %156 = vmatpush.msra.mxu0 0.0
    %157 = vmatpush.msra.mxu0 0.0
    %158 = vmatpush.msra.mxu0 0.0
    %159 = vmatpush.msra.mxu0 0.0
    %160 = vmatpush.msra.mxu0 0.0
    %161 = vmatpush.msra.mxu0 0.0
    %162 = vmatpush.msra.mxu0 0.0
    %163 = vmatpush.msra.mxu0 0.0
    %164 = vmatpush.msra.mxu0 0.0
    %165 = vmatpush.msra.mxu0 0.0
    %166 = vmatpush.msra.mxu0 0.0
    %167 = vmatpush.msra.mxu0 %v52
    %168 = vmatpush.msra.mxu0 %v51
    %169 = vmatpush.msra.mxu0 %v50
    %170 = vmatpush.msra.mxu0 %v49
    %171 = vmatmul.f32.gmra.mxu0 %v153
    %v172 = vpop.f32.mrf.mxu0
    %v173 = vadd.f32 %v91, %v172
    %174 = vdwg.mxu0
    %v176 = vsel %vm105, %v36, 0
    %178 = vmatpush.msra.mxu0 0.0
    %179 = vmatpush.msra.mxu0 0.0
    %180 = vmatpush.msra.mxu0 0.0
    %181 = vmatpush.msra.mxu0 0.0
    %182 = vmatpush.msra.mxu0 0.0
    %183 = vmatpush.msra.mxu0 0.0
    %184 = vmatpush.msra.mxu0 0.0
    %185 = vmatpush.msra.mxu0 0.0
    %186 = vmatpush.msra.mxu0 0.0
    %187 = vmatpush.msra.mxu0 0.0
    %188 = vmatpush.msra.mxu0 0.0
    %189 = vmatpush.msra.mxu0 0.0
    %190 = vmatpush.msra.mxu0 %v56
    %191 = vmatpush.msra.mxu0 %v55
    %192 = vmatpush.msra.mxu0 %v54
    %193 = vmatpush.msra.mxu0 %v53
    %194 = vmatmul.f32.gmra.mxu0 %v176
    %v195 = vpop.f32.mrf.mxu0
    %v196 = vadd.f32 %v92, %v195
    %197 = vdwg.mxu0
    %v199 = vsel %vm105, %v37, 0
    %201 = vmatpush.msra.mxu0 0.0
    %202 = vmatpush.msra.mxu0 0.0
    %203 = vmatpush.msra.mxu0 0.0
    %204 = vmatpush.msra.mxu0 0.0
    %205 = vmatpush.msra.mxu0 0.0
    %206 = vmatpush.msra.mxu0 0.0
    %207 = vmatpush.msra.mxu0 0.0
    %208 = vmatpush.msra.mxu0 0.0
    %209 = vmatpush.msra.mxu0 0.0
    %210 = vmatpush.msra.mxu0 0.0
    %211 = vmatpush.msra.mxu0 0.0
    %212 = vmatpush.msra.mxu0 0.0
    %213 = vmatpush.msra.mxu0 %v60
    %214 = vmatpush.msra.mxu0 %v59
    %215 = vmatpush.msra.mxu0 %v58
    %216 = vmatpush.msra.mxu0 %v57
    %217 = vmatmul.f32.gmra.mxu0 %v199
    %v218 = vpop.f32.mrf.mxu0
    %v219 = vadd.f32 %v93, %v218
    %220 = vdwg.mxu0
    %v222 = vsel %vm105, %v38, 0
    %224 = vmatpush.msra.mxu0 0.0
    %225 = vmatpush.msra.mxu0 0.0
    %226 = vmatpush.msra.mxu0 0.0
    %227 = vmatpush.msra.mxu0 0.0
    %228 = vmatpush.msra.mxu0 0.0
    %229 = vmatpush.msra.mxu0 0.0
    %230 = vmatpush.msra.mxu0 0.0
    %231 = vmatpush.msra.mxu0 0.0
    %232 = vmatpush.msra.mxu0 0.0
    %233 = vmatpush.msra.mxu0 0.0
    %234 = vmatpush.msra.mxu0 0.0
    %235 = vmatpush.msra.mxu0 0.0
    %236 = vmatpush.msra.mxu0 %v64
    %237 = vmatpush.msra.mxu0 %v63
    %238 = vmatpush.msra.mxu0 %v62
    %239 = vmatpush.msra.mxu0 %v61
    %240 = vmatmul.f32.gmra.mxu0 %v222
    %v241 = vpop.f32.mrf.mxu0
    %v242 = vadd.f32 %v94, %v241
    %243 = vdwg.mxu0
    %v245 = vsel %vm105, %v39, 0
    %247 = vmatpush.msra.mxu0 0.0
    %248 = vmatpush.msra.mxu0 0.0
    %249 = vmatpush.msra.mxu0 0.0
    %250 = vmatpush.msra.mxu0 0.0
    %251 = vmatpush.msra.mxu0 0.0
    %252 = vmatpush.msra.mxu0 0.0
    %253 = vmatpush.msra.mxu0 0.0
    %254 = vmatpush.msra.mxu0 0.0
    %255 = vmatpush.msra.mxu0 0.0
    %256 = vmatpush.msra.mxu0 0.0
    %257 = vmatpush.msra.mxu0 0.0
    %258 = vmatpush.msra.mxu0 0.0
    %259 = vmatpush.msra.mxu0 %v68
    %260 = vmatpush.msra.mxu0 %v67
    %261 = vmatpush.msra.mxu0 %v66
    %262 = vmatpush.msra.mxu0 %v65
    %263 = vmatmul.f32.gmra.mxu0 %v245
    %v264 = vpop.f32.mrf.mxu0
    %v265 = vadd.f32 %v95, %v264
    %266 = vdwg.mxu0
    %v268 = vsel %vm105, %v40, 0
    %270 = vmatpush.msra.mxu0 0.0
    %271 = vmatpush.msra.mxu0 0.0
    %272 = vmatpush.msra.mxu0 0.0
    %273 = vmatpush.msra.mxu0 0.0
    %274 = vmatpush.msra.mxu0 0.0
    %275 = vmatpush.msra.mxu0 0.0
    %276 = vmatpush.msra.mxu0 0.0
    %277 = vmatpush.msra.mxu0 0.0
    %278 = vmatpush.msra.mxu0 0.0
    %279 = vmatpush.msra.mxu0 0.0
    %280 = vmatpush.msra.mxu0 0.0
    %281 = vmatpush.msra.mxu0 0.0
    %282 = vmatpush.msra.mxu0 %v72
    %283 = vmatpush.msra.mxu0 %v71
    %284 = vmatpush.msra.mxu0 %v70
    %285 = vmatpush.msra.mxu0 %v69
    %286 = vmatmul.f32.gmra.mxu0 %v268
    %v287 = vpop.f32.mrf.mxu0
    %v288 = vadd.f32 %v96, %v287
    %289 = vdwg.mxu0
    %v290 = vld [vmem:[%s2] sm:$0x1]
    %v291 = vld [vmem:[%s2 + $0x1] sm:$0x1]
    %v292 = vld [vmem:[%s2 + $0x2] sm:$0x1]
    %v293 = vld [vmem:[%s2 + $0x3] sm:$0x1]
    %v294 = vld [vmem:[%s2 + $0x4] sm:$0x1]
    %v295 = vld [vmem:[%s2 + $0x5] sm:$0x1]
    %v296 = vld [vmem:[%s2 + $0x6] sm:$0x1]
    %v297 = vld [vmem:[%s2 + $0x7] sm:$0x1]
    %v306 = vperm.slane %v290, 0
    %v307 = vperm.slane %v291, 0
    %v308 = vperm.slane %v292, 0
    %v309 = vperm.slane %v293, 0
    %v310 = vperm.slane %v294, 0
    %v311 = vperm.slane %v295, 0
    %v312 = vperm.slane %v296, 0
    %v313 = vperm.slane %v297, 0
    %323 = vrot.lane.b32.xlu0 %v127, 120
    %v324 = vpop.permute.xlu0 %323
    %vm325 = vcmask 64512
    %v326 = vsel %vm325, %v127, 0
    %v328 = vsel %vm325, %v324, 0
    %330 = vmatpush.xpose.msra.mxu0 0.0
    %331 = vmatpush.xpose.msra.mxu0 0.0
    %332 = vmatpush.xpose.msra.mxu0 0.0
    %333 = vmatpush.xpose.msra.mxu0 0.0
    %334 = vmatpush.xpose.msra.mxu0 0.0
    %335 = vmatpush.xpose.msra.mxu0 0.0
    %336 = vmatpush.xpose.msra.mxu0 0.0
    %337 = vmatpush.xpose.msra.mxu0 0.0
    %338 = vmatpush.xpose.msra.mxu0 0.0
    %339 = vmatpush.xpose.msra.mxu0 0.0
    %340 = vmatpush.xpose.msra.mxu0 0.0
    %341 = vmatpush.xpose.msra.mxu0 0.0
    %342 = vmatpush.xpose.msra.mxu0 0.0
    %343 = vmatpush.xpose.msra.mxu0 0.0
    %344 = vmatpush.xpose.msra.mxu0 0.0
    %345 = vmatpush.xpose.msra.mxu0 %v328
    %346 = vmatmul.f32.gmra.mxu0 %v326
    %v347 = vpop.f32.mrf.mxu0
    %v348 = vadd.f32 %v306, %v347
    %349 = vdwg.mxu0
    %351 = vrot.lane.b32.xlu0 %v150, 120
    %v352 = vpop.permute.xlu0 %351
    %v353 = vsel %vm325, %v150, 0
    %v355 = vsel %vm325, %v352, 0
    %357 = vmatpush.xpose.msra.mxu0 0.0
    %358 = vmatpush.xpose.msra.mxu0 0.0
    %359 = vmatpush.xpose.msra.mxu0 0.0
    %360 = vmatpush.xpose.msra.mxu0 0.0
    %361 = vmatpush.xpose.msra.mxu0 0.0
    %362 = vmatpush.xpose.msra.mxu0 0.0
    %363 = vmatpush.xpose.msra.mxu0 0.0
    %364 = vmatpush.xpose.msra.mxu0 0.0
    %365 = vmatpush.xpose.msra.mxu0 0.0
    %366 = vmatpush.xpose.msra.mxu0 0.0
    %367 = vmatpush.xpose.msra.mxu0 0.0
    %368 = vmatpush.xpose.msra.mxu0 0.0
    %369 = vmatpush.xpose.msra.mxu0 0.0
    %370 = vmatpush.xpose.msra.mxu0 0.0
    %371 = vmatpush.xpose.msra.mxu0 0.0
    %372 = vmatpush.xpose.msra.mxu0 %v355
    %373 = vmatmul.f32.gmra.mxu0 %v353
    %v374 = vpop.f32.mrf.mxu0
    %v375 = vadd.f32 %v307, %v374
    %376 = vdwg.mxu0
    %378 = vrot.lane.b32.xlu0 %v173, 120
    %v379 = vpop.permute.xlu0 %378
    %v380 = vsel %vm325, %v173, 0
    %v382 = vsel %vm325, %v379, 0
    %384 = vmatpush.xpose.msra.mxu0 0.0
    %385 = vmatpush.xpose.msra.mxu0 0.0
    %386 = vmatpush.xpose.msra.mxu0 0.0
    %387 = vmatpush.xpose.msra.mxu0 0.0
    %388 = vmatpush.xpose.msra.mxu0 0.0
    %389 = vmatpush.xpose.msra.mxu0 0.0
    %390 = vmatpush.xpose.msra.mxu0 0.0
    %391 = vmatpush.xpose.msra.mxu0 0.0
    %392 = vmatpush.xpose.msra.mxu0 0.0
    %393 = vmatpush.xpose.msra.mxu0 0.0
    %394 = vmatpush.xpose.msra.mxu0 0.0
    %395 = vmatpush.xpose.msra.mxu0 0.0
    %396 = vmatpush.xpose.msra.mxu0 0.0
    %397 = vmatpush.xpose.msra.mxu0 0.0
    %398 = vmatpush.xpose.msra.mxu0 0.0
    %399 = vmatpush.xpose.msra.mxu0 %v382
    %400 = vmatmul.f32.gmra.mxu0 %v380
    %v401 = vpop.f32.mrf.mxu0
    %v402 = vadd.f32 %v308, %v401
    %403 = vdwg.mxu0
    %405 = vrot.lane.b32.xlu0 %v196, 120
    %v406 = vpop.permute.xlu0 %405
    %v407 = vsel %vm325, %v196, 0
    %v409 = vsel %vm325, %v406, 0
    %411 = vmatpush.xpose.msra.mxu0 0.0
    %412 = vmatpush.xpose.msra.mxu0 0.0
    %413 = vmatpush.xpose.msra.mxu0 0.0
    %414 = vmatpush.xpose.msra.mxu0 0.0
    %415 = vmatpush.xpose.msra.mxu0 0.0
    %416 = vmatpush.xpose.msra.mxu0 0.0
    %417 = vmatpush.xpose.msra.mxu0 0.0
    %418 = vmatpush.xpose.msra.mxu0 0.0
    %419 = vmatpush.xpose.msra.mxu0 0.0
    %420 = vmatpush.xpose.msra.mxu0 0.0
    %421 = vmatpush.xpose.msra.mxu0 0.0
    %422 = vmatpush.xpose.msra.mxu0 0.0
    %423 = vmatpush.xpose.msra.mxu0 0.0
    %424 = vmatpush.xpose.msra.mxu0 0.0
    %425 = vmatpush.xpose.msra.mxu0 0.0
    %426 = vmatpush.xpose.msra.mxu0 %v409
    %427 = vmatmul.f32.gmra.mxu0 %v407
    %v428 = vpop.f32.mrf.mxu0
    %v429 = vadd.f32 %v309, %v428
    %430 = vdwg.mxu0
    %432 = vrot.lane.b32.xlu0 %v219, 120
    %v433 = vpop.permute.xlu0 %432
    %v434 = vsel %vm325, %v219, 0
    %v436 = vsel %vm325, %v433, 0
    %438 = vmatpush.xpose.msra.mxu0 0.0
    %439 = vmatpush.xpose.msra.mxu0 0.0
    %440 = vmatpush.xpose.msra.mxu0 0.0
    %441 = vmatpush.xpose.msra.mxu0 0.0
    %442 = vmatpush.xpose.msra.mxu0 0.0
    %443 = vmatpush.xpose.msra.mxu0 0.0
    %444 = vmatpush.xpose.msra.mxu0 0.0
    %445 = vmatpush.xpose.msra.mxu0 0.0
    %446 = vmatpush.xpose.msra.mxu0 0.0
    %447 = vmatpush.xpose.msra.mxu0 0.0
    %448 = vmatpush.xpose.msra.mxu0 0.0
    %449 = vmatpush.xpose.msra.mxu0 0.0
    %450 = vmatpush.xpose.msra.mxu0 0.0
    %451 = vmatpush.xpose.msra.mxu0 0.0
    %452 = vmatpush.xpose.msra.mxu0 0.0
    %453 = vmatpush.xpose.msra.mxu0 %v436
    %454 = vmatmul.f32.gmra.mxu0 %v434
    %v455 = vpop.f32.mrf.mxu0
    %v456 = vadd.f32 %v310, %v455
    %457 = vdwg.mxu0
    %459 = vrot.lane.b32.xlu0 %v242, 120
    %v460 = vpop.permute.xlu0 %459
    %v461 = vsel %vm325, %v242, 0
    %v463 = vsel %vm325, %v460, 0
    %465 = vmatpush.xpose.msra.mxu0 0.0
    %466 = vmatpush.xpose.msra.mxu0 0.0
    %467 = vmatpush.xpose.msra.mxu0 0.0
    %468 = vmatpush.xpose.msra.mxu0 0.0
    %469 = vmatpush.xpose.msra.mxu0 0.0
    %470 = vmatpush.xpose.msra.mxu0 0.0
    %471 = vmatpush.xpose.msra.mxu0 0.0
    %472 = vmatpush.xpose.msra.mxu0 0.0
    %473 = vmatpush.xpose.msra.mxu0 0.0
    %474 = vmatpush.xpose.msra.mxu0 0.0
    %475 = vmatpush.xpose.msra.mxu0 0.0
    %476 = vmatpush.xpose.msra.mxu0 0.0
    %477 = vmatpush.xpose.msra.mxu0 0.0
    %478 = vmatpush.xpose.msra.mxu0 0.0
    %479 = vmatpush.xpose.msra.mxu0 0.0
    %480 = vmatpush.xpose.msra.mxu0 %v463
    %481 = vmatmul.f32.gmra.mxu0 %v461
    %v482 = vpop.f32.mrf.mxu0
    %v483 = vadd.f32 %v311, %v482
    %484 = vdwg.mxu0
    %486 = vrot.lane.b32.xlu0 %v265, 120
    %v487 = vpop.permute.xlu0 %486
    %v488 = vsel %vm325, %v265, 0
    %v490 = vsel %vm325, %v487, 0
    %492 = vmatpush.xpose.msra.mxu0 0.0
    %493 = vmatpush.xpose.msra.mxu0 0.0
    %494 = vmatpush.xpose.msra.mxu0 0.0
    %495 = vmatpush.xpose.msra.mxu0 0.0
    %496 = vmatpush.xpose.msra.mxu0 0.0
    %497 = vmatpush.xpose.msra.mxu0 0.0
    %498 = vmatpush.xpose.msra.mxu0 0.0
    %499 = vmatpush.xpose.msra.mxu0 0.0
    %500 = vmatpush.xpose.msra.mxu0 0.0
    %501 = vmatpush.xpose.msra.mxu0 0.0
    %502 = vmatpush.xpose.msra.mxu0 0.0
    %503 = vmatpush.xpose.msra.mxu0 0.0
    %504 = vmatpush.xpose.msra.mxu0 0.0
    %505 = vmatpush.xpose.msra.mxu0 0.0
    %506 = vmatpush.xpose.msra.mxu0 0.0
    %507 = vmatpush.xpose.msra.mxu0 %v490
    %508 = vmatmul.f32.gmra.mxu0 %v488
    %v509 = vpop.f32.mrf.mxu0
    %v510 = vadd.f32 %v312, %v509
    %511 = vdwg.mxu0
    %513 = vrot.lane.b32.xlu0 %v288, 120
    %v514 = vpop.permute.xlu0 %513
    %v515 = vsel %vm325, %v288, 0
    %v517 = vsel %vm325, %v514, 0
    %519 = vmatpush.xpose.msra.mxu0 0.0
    %520 = vmatpush.xpose.msra.mxu0 0.0
    %521 = vmatpush.xpose.msra.mxu0 0.0
    %522 = vmatpush.xpose.msra.mxu0 0.0
    %523 = vmatpush.xpose.msra.mxu0 0.0
    %524 = vmatpush.xpose.msra.mxu0 0.0
    %525 = vmatpush.xpose.msra.mxu0 0.0
    %526 = vmatpush.xpose.msra.mxu0 0.0
    %527 = vmatpush.xpose.msra.mxu0 0.0
    %528 = vmatpush.xpose.msra.mxu0 0.0
    %529 = vmatpush.xpose.msra.mxu0 0.0
    %530 = vmatpush.xpose.msra.mxu0 0.0
    %531 = vmatpush.xpose.msra.mxu0 0.0
    %532 = vmatpush.xpose.msra.mxu0 0.0
    %533 = vmatpush.xpose.msra.mxu0 0.0
    %534 = vmatpush.xpose.msra.mxu0 %v517
    %535 = vmatmul.f32.gmra.mxu0 %v515
    %v536 = vpop.f32.mrf.mxu0
    %v537 = vadd.f32 %v313, %v536
    %538 = vdwg.mxu0
    %v539 = vsel %vm325, %v348, -inf
    %540 = vmax.xlane.f32.xlu0 %v539
    %v541 = vpop.xlane.xlu0 %540
    %v542 = vsel %vm325, %v375, -inf
    %543 = vmax.xlane.f32.xlu0 %v542
    %v544 = vpop.xlane.xlu0 %543
    %v545 = vsel %vm325, %v402, -inf
    %546 = vmax.xlane.f32.xlu0 %v545
    %v547 = vpop.xlane.xlu0 %546
    %v548 = vsel %vm325, %v429, -inf
    %549 = vmax.xlane.f32.xlu0 %v548
    %v550 = vpop.xlane.xlu0 %549
    %v551 = vsel %vm325, %v456, -inf
    %552 = vmax.xlane.f32.xlu0 %v551
    %v553 = vpop.xlane.xlu0 %552
    %v554 = vsel %vm325, %v483, -inf
    %555 = vmax.xlane.f32.xlu0 %v554
    %v556 = vpop.xlane.xlu0 %555
    %v557 = vsel %vm325, %v510, -inf
    %558 = vmax.xlane.f32.xlu0 %v557
    %v559 = vpop.xlane.xlu0 %558
    %v560 = vsel %vm325, %v537, -inf
    %561 = vmax.xlane.f32.xlu0 %v560
    %v562 = vpop.xlane.xlu0 %561
    %v563 = vsub.f32 %v348, %v541
    %v564 = vsub.f32 %v375, %v544
    %v565 = vsub.f32 %v402, %v547
    %v566 = vsub.f32 %v429, %v550
    %v567 = vsub.f32 %v456, %v553
    %v568 = vsub.f32 %v483, %v556
    %v569 = vsub.f32 %v510, %v559
    %v570 = vsub.f32 %v537, %v562
    %v571 = vmul.f32 %v563, 1.442695
    %v572 = vpow.pop %v571
    %v573 = vmul.f32 %v564, 1.442695
    %v574 = vpow.pop %v573
    %v575 = vmul.f32 %v565, 1.442695
    %v576 = vpow.pop %v575
    %v577 = vmul.f32 %v566, 1.442695
    %v578 = vpow.pop %v577
    %v579 = vmul.f32 %v567, 1.442695
    %v580 = vpow.pop %v579
    %v581 = vmul.f32 %v568, 1.442695
    %v582 = vpow.pop %v581
    %v583 = vmul.f32 %v569, 1.442695
    %v584 = vpow.pop %v583
    %v585 = vmul.f32 %v570, 1.442695
    %v586 = vpow.pop %v585
    %v587 = vsel %vm325, %v572, 0.0
    %588 = vadd.xlane.f32.xlu0 %v587
    %v589 = vpop.xlane.xlu0 %588
    %v590 = vsel %vm325, %v574, 0.0
    %591 = vadd.xlane.f32.xlu0 %v590
    %v592 = vpop.xlane.xlu0 %591
    %v593 = vsel %vm325, %v576, 0.0
    %594 = vadd.xlane.f32.xlu0 %v593
    %v595 = vpop.xlane.xlu0 %594
    %v596 = vsel %vm325, %v578, 0.0
    %597 = vadd.xlane.f32.xlu0 %v596
    %v598 = vpop.xlane.xlu0 %597
    %v599 = vsel %vm325, %v580, 0.0
    %600 = vadd.xlane.f32.xlu0 %v599
    %v601 = vpop.xlane.xlu0 %600
    %v602 = vsel %vm325, %v582, 0.0
    %603 = vadd.xlane.f32.xlu0 %v602
    %v604 = vpop.xlane.xlu0 %603
    %v605 = vsel %vm325, %v584, 0.0
    %606 = vadd.xlane.f32.xlu0 %v605
    %v607 = vpop.xlane.xlu0 %606
    %v608 = vsel %vm325, %v586, 0.0
    %609 = vadd.xlane.f32.xlu0 %v608
    %v610 = vpop.xlane.xlu0 %609
    %611 = vrot.lane.b32.xlu0 %v127, 112
    %v612 = vpop.permute.xlu0 %611
    %v615 = vsel %vm325, %v572, 0
    %617 = vmatpush.msra.mxu0 0.0
    %618 = vmatpush.msra.mxu0 0.0
    %619 = vmatpush.msra.mxu0 0.0
    %620 = vmatpush.msra.mxu0 0.0
    %621 = vmatpush.msra.mxu0 0.0
    %622 = vmatpush.msra.mxu0 0.0
    %623 = vmatpush.msra.mxu0 0.0
    %624 = vmatpush.msra.mxu0 0.0
    %625 = vmatpush.msra.mxu0 0.0
    %626 = vmatpush.msra.mxu0 0.0
    %627 = vmatpush.msra.mxu0 0.0
    %628 = vmatpush.msra.mxu0 0.0
    %629 = vmatpush.msra.mxu0 0.0
    %630 = vmatpush.msra.mxu0 0.0
    %631 = vmatpush.msra.mxu0 0.0
    %632 = vmatpush.msra.mxu0 %v612
    %633 = vmatmul.f32.gmra.mxu0 %v615
    %v634 = vpop.f32.mrf.mxu0
    %v635 = vadd.f32 0.0, %v634
    %636 = vdwg.mxu0
    %637 = vrot.lane.b32.xlu0 %v150, 112
    %v638 = vpop.permute.xlu0 %637
    %v641 = vsel %vm325, %v574, 0
    %643 = vmatpush.msra.mxu0 0.0
    %644 = vmatpush.msra.mxu0 0.0
    %645 = vmatpush.msra.mxu0 0.0
    %646 = vmatpush.msra.mxu0 0.0
    %647 = vmatpush.msra.mxu0 0.0
    %648 = vmatpush.msra.mxu0 0.0
    %649 = vmatpush.msra.mxu0 0.0
    %650 = vmatpush.msra.mxu0 0.0
    %651 = vmatpush.msra.mxu0 0.0
    %652 = vmatpush.msra.mxu0 0.0
    %653 = vmatpush.msra.mxu0 0.0
    %654 = vmatpush.msra.mxu0 0.0
    %655 = vmatpush.msra.mxu0 0.0
    %656 = vmatpush.msra.mxu0 0.0
    %657 = vmatpush.msra.mxu0 0.0
    %658 = vmatpush.msra.mxu0 %v638
    %659 = vmatmul.f32.gmra.mxu0 %v641
    %v660 = vpop.f32.mrf.mxu0
    %v661 = vadd.f32 0.0, %v660
    %662 = vdwg.mxu0
    %663 = vrot.lane.b32.xlu0 %v173, 112
    %v664 = vpop.permute.xlu0 %663
    %v667 = vsel %vm325, %v576, 0
    %669 = vmatpush.msra.mxu0 0.0
    %670 = vmatpush.msra.mxu0 0.0
    %671 = vmatpush.msra.mxu0 0.0
    %672 = vmatpush.msra.mxu0 0.0
    %673 = vmatpush.msra.mxu0 0.0
    %674 = vmatpush.msra.mxu0 0.0
    %675 = vmatpush.msra.mxu0 0.0
    %676 = vmatpush.msra.mxu0 0.0
    %677 = vmatpush.msra.mxu0 0.0
    %678 = vmatpush.msra.mxu0 0.0
    %679 = vmatpush.msra.mxu0 0.0
    %680 = vmatpush.msra.mxu0 0.0
    %681 = vmatpush.msra.mxu0 0.0
    %682 = vmatpush.msra.mxu0 0.0
    %683 = vmatpush.msra.mxu0 0.0
    %684 = vmatpush.msra.mxu0 %v664
    %685 = vmatmul.f32.gmra.mxu0 %v667
    %v686 = vpop.f32.mrf.mxu0
    %v687 = vadd.f32 0.0, %v686
    %688 = vdwg.mxu0
    %689 = vrot.lane.b32.xlu0 %v196, 112
    %v690 = vpop.permute.xlu0 %689
    %v693 = vsel %vm325, %v578, 0
    %695 = vmatpush.msra.mxu0 0.0
    %696 = vmatpush.msra.mxu0 0.0
    %697 = vmatpush.msra.mxu0 0.0
    %698 = vmatpush.msra.mxu0 0.0
    %699 = vmatpush.msra.mxu0 0.0
    %700 = vmatpush.msra.mxu0 0.0
    %701 = vmatpush.msra.mxu0 0.0
    %702 = vmatpush.msra.mxu0 0.0
    %703 = vmatpush.msra.mxu0 0.0
    %704 = vmatpush.msra.mxu0 0.0
    %705 = vmatpush.msra.mxu0 0.0
    %706 = vmatpush.msra.mxu0 0.0
    %707 = vmatpush.msra.mxu0 0.0
    %708 = vmatpush.msra.mxu0 0.0
    %709 = vmatpush.msra.mxu0 0.0
    %710 = vmatpush.msra.mxu0 %v690
    %711 = vmatmul.f32.gmra.mxu0 %v693
    %v712 = vpop.f32.mrf.mxu0
    %v713 = vadd.f32 0.0, %v712
    %714 = vdwg.mxu0
    %715 = vrot.lane.b32.xlu0 %v219, 112
    %v716 = vpop.permute.xlu0 %715
    %v719 = vsel %vm325, %v580, 0
    %721 = vmatpush.msra.mxu0 0.0
    %722 = vmatpush.msra.mxu0 0.0
    %723 = vmatpush.msra.mxu0 0.0
    %724 = vmatpush.msra.mxu0 0.0
    %725 = vmatpush.msra.mxu0 0.0
    %726 = vmatpush.msra.mxu0 0.0
    %727 = vmatpush.msra.mxu0 0.0
    %728 = vmatpush.msra.mxu0 0.0
    %729 = vmatpush.msra.mxu0 0.0
    %730 = vmatpush.msra.mxu0 0.0
    %731 = vmatpush.msra.mxu0 0.0
    %732 = vmatpush.msra.mxu0 0.0
    %733 = vmatpush.msra.mxu0 0.0
    %734 = vmatpush.msra.mxu0 0.0
    %735 = vmatpush.msra.mxu0 0.0
    %736 = vmatpush.msra.mxu0 %v716
    %737 = vmatmul.f32.gmra.mxu0 %v719
    %v738 = vpop.f32.mrf.mxu0
    %v739 = vadd.f32 0.0, %v738
    %740 = vdwg.mxu0
    %741 = vrot.lane.b32.xlu0 %v242, 112
    %v742 = vpop.permute.xlu0 %741
    %v745 = vsel %vm325, %v582, 0
    %747 = vmatpush.msra.mxu0 0.0
    %748 = vmatpush.msra.mxu0 0.0
    %749 = vmatpush.msra.mxu0 0.0
    %750 = vmatpush.msra.mxu0 0.0
    %751 = vmatpush.msra.mxu0 0.0
    %752 = vmatpush.msra.mxu0 0.0
    %753 = vmatpush.msra.mxu0 0.0
    %754 = vmatpush.msra.mxu0 0.0
    %755 = vmatpush.msra.mxu0 0.0
    %756 = vmatpush.msra.mxu0 0.0
    %757 = vmatpush.msra.mxu0 0.0
    %758 = vmatpush.msra.mxu0 0.0
    %759 = vmatpush.msra.mxu0 0.0
    %760 = vmatpush.msra.mxu0 0.0
    %761 = vmatpush.msra.mxu0 0.0
    %762 = vmatpush.msra.mxu0 %v742
    %763 = vmatmul.f32.gmra.mxu0 %v745
    %v764 = vpop.f32.mrf.mxu0
    %v765 = vadd.f32 0.0, %v764
    %766 = vdwg.mxu0
    %767 = vrot.lane.b32.xlu0 %v265, 112
    %v768 = vpop.permute.xlu0 %767
    %v771 = vsel %vm325, %v584, 0
    %773 = vmatpush.msra.mxu0 0.0
    %774 = vmatpush.msra.mxu0 0.0
    %775 = vmatpush.msra.mxu0 0.0
    %776 = vmatpush.msra.mxu0 0.0
    %777 = vmatpush.msra.mxu0 0.0
    %778 = vmatpush.msra.mxu0 0.0
    %779 = vmatpush.msra.mxu0 0.0
    %780 = vmatpush.msra.mxu0 0.0
    %781 = vmatpush.msra.mxu0 0.0
    %782 = vmatpush.msra.mxu0 0.0
    %783 = vmatpush.msra.mxu0 0.0
    %784 = vmatpush.msra.mxu0 0.0
    %785 = vmatpush.msra.mxu0 0.0
    %786 = vmatpush.msra.mxu0 0.0
    %787 = vmatpush.msra.mxu0 0.0
    %788 = vmatpush.msra.mxu0 %v768
    %789 = vmatmul.f32.gmra.mxu0 %v771
    %v790 = vpop.f32.mrf.mxu0
    %v791 = vadd.f32 0.0, %v790
    %792 = vdwg.mxu0
    %793 = vrot.lane.b32.xlu0 %v288, 112
    %v794 = vpop.permute.xlu0 %793
    %v797 = vsel %vm325, %v586, 0
    %799 = vmatpush.msra.mxu0 0.0
    %800 = vmatpush.msra.mxu0 0.0
    %801 = vmatpush.msra.mxu0 0.0
    %802 = vmatpush.msra.mxu0 0.0
    %803 = vmatpush.msra.mxu0 0.0
    %804 = vmatpush.msra.mxu0 0.0
    %805 = vmatpush.msra.mxu0 0.0
    %806 = vmatpush.msra.mxu0 0.0
    %807 = vmatpush.msra.mxu0 0.0
    %808 = vmatpush.msra.mxu0 0.0
    %809 = vmatpush.msra.mxu0 0.0
    %810 = vmatpush.msra.mxu0 0.0
    %811 = vmatpush.msra.mxu0 0.0
    %812 = vmatpush.msra.mxu0 0.0
    %813 = vmatpush.msra.mxu0 0.0
    %814 = vmatpush.msra.mxu0 %v794
    %815 = vmatmul.f32.gmra.mxu0 %v797
    %v816 = vpop.f32.mrf.mxu0
    %v817 = vadd.f32 0.0, %v816
    %818 = vdwg.mxu0
    %v819 = vrcp.pop %v589
    %v820 = vrcp.pop %v592
    %v821 = vrcp.pop %v595
    %v822 = vrcp.pop %v598
    %v823 = vrcp.pop %v601
    %v824 = vrcp.pop %v604
    %v825 = vrcp.pop %v607
    %v826 = vrcp.pop %v610
    %v827 = vmul.f32 %v635, %v819
    %v828 = vmul.f32 %v661, %v820
    %v829 = vmul.f32 %v687, %v821
    %v830 = vmul.f32 %v713, %v822
    %v831 = vmul.f32 %v739, %v823
    %v832 = vmul.f32 %v765, %v824
    %v833 = vmul.f32 %v791, %v825
    %v834 = vmul.f32 %v817, %v826
    %v835 = vld [vmem:[%s5] sm:$0xff]
    %v836 = vld [vmem:[%s5 + $0x8] sm:$0xff]
    %v837 = vld [vmem:[%s5 + $0x10] sm:$0xff]
    %v838 = vld [vmem:[%s5 + $0x18] sm:$0xff]
    %v839 = vld [vmem:[%s5 + $0x20] sm:$0xff]
    %v840 = vld [vmem:[%s5 + $0x28] sm:$0xff]
    %v841 = vld [vmem:[%s5 + $0x30] sm:$0xff]
    %v842 = vld [vmem:[%s5 + $0x38] sm:$0xff]
    %v844 = vsel %vm325, %v827, 0
    %846 = vmatpush.msra.mxu0 0.0
    %847 = vmatpush.msra.mxu0 0.0
    %848 = vmatpush.msra.mxu0 0.0
    %849 = vmatpush.msra.mxu0 0.0
    %850 = vmatpush.msra.mxu0 0.0
    %851 = vmatpush.msra.mxu0 0.0
    %852 = vmatpush.msra.mxu0 0.0
    %853 = vmatpush.msra.mxu0 0.0
    %854 = vmatpush.msra.mxu0 0.0
    %855 = vmatpush.msra.mxu0 0.0
    %856 = vmatpush.msra.mxu0 0.0
    %857 = vmatpush.msra.mxu0 0.0
    %858 = vmatpush.msra.mxu0 0.0
    %859 = vmatpush.msra.mxu0 0.0
    %860 = vmatpush.msra.mxu0 0.0
    %861 = vmatpush.msra.mxu0 %v835
    %862 = vmatmul.f32.gmra.mxu0 %v844
    %v863 = vpop.f32.mrf.mxu0
    %v864 = vadd.f32 0.0, %v863
    %865 = vdwg.mxu0
    %v867 = vsel %vm325, %v828, 0
    %869 = vmatpush.msra.mxu0 0.0
    %870 = vmatpush.msra.mxu0 0.0
    %871 = vmatpush.msra.mxu0 0.0
    %872 = vmatpush.msra.mxu0 0.0
    %873 = vmatpush.msra.mxu0 0.0
    %874 = vmatpush.msra.mxu0 0.0
    %875 = vmatpush.msra.mxu0 0.0
    %876 = vmatpush.msra.mxu0 0.0
    %877 = vmatpush.msra.mxu0 0.0
    %878 = vmatpush.msra.mxu0 0.0
    %879 = vmatpush.msra.mxu0 0.0
    %880 = vmatpush.msra.mxu0 0.0
    %881 = vmatpush.msra.mxu0 0.0
    %882 = vmatpush.msra.mxu0 0.0
    %883 = vmatpush.msra.mxu0 0.0
    %884 = vmatpush.msra.mxu0 %v836
    %885 = vmatmul.f32.gmra.mxu0 %v867
    %v886 = vpop.f32.mrf.mxu0
    %v887 = vadd.f32 0.0, %v886
    %888 = vdwg.mxu0
    %v890 = vsel %vm325, %v829, 0
    %892 = vmatpush.msra.mxu0 0.0
    %893 = vmatpush.msra.mxu0 0.0
    %894 = vmatpush.msra.mxu0 0.0
    %895 = vmatpush.msra.mxu0 0.0
    %896 = vmatpush.msra.mxu0 0.0
    %897 = vmatpush.msra.mxu0 0.0
    %898 = vmatpush.msra.mxu0 0.0
    %899 = vmatpush.msra.mxu0 0.0
    %900 = vmatpush.msra.mxu0 0.0
    %901 = vmatpush.msra.mxu0 0.0
    %902 = vmatpush.msra.mxu0 0.0
    %903 = vmatpush.msra.mxu0 0.0
    %904 = vmatpush.msra.mxu0 0.0
    %905 = vmatpush.msra.mxu0 0.0
    %906 = vmatpush.msra.mxu0 0.0
    %907 = vmatpush.msra.mxu0 %v837
    %908 = vmatmul.f32.gmra.mxu0 %v890
    %v909 = vpop.f32.mrf.mxu0
    %v910 = vadd.f32 0.0, %v909
    %911 = vdwg.mxu0
    %v913 = vsel %vm325, %v830, 0
    %915 = vmatpush.msra.mxu0 0.0
    %916 = vmatpush.msra.mxu0 0.0
    %917 = vmatpush.msra.mxu0 0.0
    %918 = vmatpush.msra.mxu0 0.0
    %919 = vmatpush.msra.mxu0 0.0
    %920 = vmatpush.msra.mxu0 0.0
    %921 = vmatpush.msra.mxu0 0.0
    %922 = vmatpush.msra.mxu0 0.0
    %923 = vmatpush.msra.mxu0 0.0
    %924 = vmatpush.msra.mxu0 0.0
    %925 = vmatpush.msra.mxu0 0.0
    %926 = vmatpush.msra.mxu0 0.0
    %927 = vmatpush.msra.mxu0 0.0
    %928 = vmatpush.msra.mxu0 0.0
    %929 = vmatpush.msra.mxu0 0.0
    %930 = vmatpush.msra.mxu0 %v838
    %931 = vmatmul.f32.gmra.mxu0 %v913
    %v932 = vpop.f32.mrf.mxu0
    %v933 = vadd.f32 0.0, %v932
    %934 = vdwg.mxu0
    %v936 = vsel %vm325, %v831, 0
    %938 = vmatpush.msra.mxu0 0.0
    %939 = vmatpush.msra.mxu0 0.0
    %940 = vmatpush.msra.mxu0 0.0
    %941 = vmatpush.msra.mxu0 0.0
    %942 = vmatpush.msra.mxu0 0.0
    %943 = vmatpush.msra.mxu0 0.0
    %944 = vmatpush.msra.mxu0 0.0
    %945 = vmatpush.msra.mxu0 0.0
    %946 = vmatpush.msra.mxu0 0.0
    %947 = vmatpush.msra.mxu0 0.0
    %948 = vmatpush.msra.mxu0 0.0
    %949 = vmatpush.msra.mxu0 0.0
    %950 = vmatpush.msra.mxu0 0.0
    %951 = vmatpush.msra.mxu0 0.0
    %952 = vmatpush.msra.mxu0 0.0
    %953 = vmatpush.msra.mxu0 %v839
    %954 = vmatmul.f32.gmra.mxu0 %v936
    %v955 = vpop.f32.mrf.mxu0
    %v956 = vadd.f32 0.0, %v955
    %957 = vdwg.mxu0
    %v959 = vsel %vm325, %v832, 0
    %961 = vmatpush.msra.mxu0 0.0
    %962 = vmatpush.msra.mxu0 0.0
    %963 = vmatpush.msra.mxu0 0.0
    %964 = vmatpush.msra.mxu0 0.0
    %965 = vmatpush.msra.mxu0 0.0
    %966 = vmatpush.msra.mxu0 0.0
    %967 = vmatpush.msra.mxu0 0.0
    %968 = vmatpush.msra.mxu0 0.0
    %969 = vmatpush.msra.mxu0 0.0
    %970 = vmatpush.msra.mxu0 0.0
    %971 = vmatpush.msra.mxu0 0.0
    %972 = vmatpush.msra.mxu0 0.0
    %973 = vmatpush.msra.mxu0 0.0
    %974 = vmatpush.msra.mxu0 0.0
    %975 = vmatpush.msra.mxu0 0.0
    %976 = vmatpush.msra.mxu0 %v840
    %977 = vmatmul.f32.gmra.mxu0 %v959
    %v978 = vpop.f32.mrf.mxu0
    %v979 = vadd.f32 0.0, %v978
    %980 = vdwg.mxu0
    %v982 = vsel %vm325, %v833, 0
    %984 = vmatpush.msra.mxu0 0.0
    %985 = vmatpush.msra.mxu0 0.0
    %986 = vmatpush.msra.mxu0 0.0
    %987 = vmatpush.msra.mxu0 0.0
    %988 = vmatpush.msra.mxu0 0.0
    %989 = vmatpush.msra.mxu0 0.0
    %990 = vmatpush.msra.mxu0 0.0
    %991 = vmatpush.msra.mxu0 0.0
    %992 = vmatpush.msra.mxu0 0.0
    %993 = vmatpush.msra.mxu0 0.0
    %994 = vmatpush.msra.mxu0 0.0
    %995 = vmatpush.msra.mxu0 0.0
    %996 = vmatpush.msra.mxu0 0.0
    %997 = vmatpush.msra.mxu0 0.0
    %998 = vmatpush.msra.mxu0 0.0
    %999 = vmatpush.msra.mxu0 %v841
    %1000 = vmatmul.f32.gmra.mxu0 %v982
    %v1001 = vpop.f32.mrf.mxu0
    %v1002 = vadd.f32 0.0, %v1001
    %1003 = vdwg.mxu0
    %v1005 = vsel %vm325, %v834, 0
    %1007 = vmatpush.msra.mxu0 0.0
    %1008 = vmatpush.msra.mxu0 0.0
    %1009 = vmatpush.msra.mxu0 0.0
    %1010 = vmatpush.msra.mxu0 0.0
    %1011 = vmatpush.msra.mxu0 0.0
    %1012 = vmatpush.msra.mxu0 0.0
    %1013 = vmatpush.msra.mxu0 0.0
    %1014 = vmatpush.msra.mxu0 0.0
    %1015 = vmatpush.msra.mxu0 0.0
    %1016 = vmatpush.msra.mxu0 0.0
    %1017 = vmatpush.msra.mxu0 0.0
    %1018 = vmatpush.msra.mxu0 0.0
    %1019 = vmatpush.msra.mxu0 0.0
    %1020 = vmatpush.msra.mxu0 0.0
    %1021 = vmatpush.msra.mxu0 0.0
    %1022 = vmatpush.msra.mxu0 %v842
    %1023 = vmatmul.f32.gmra.mxu0 %v1005
    %v1024 = vpop.f32.mrf.mxu0
    %v1025 = vadd.f32 0.0, %v1024
    %1026 = vdwg.mxu0
    %v1027 = vadd.f32 %v864, %v887
    %v1028 = vadd.f32 %v956, %v979
    %v1029 = vadd.f32 %v1027, %v910
    %v1030 = vadd.f32 %v1028, %v1002
    %v1031 = vadd.f32 %v1029, %v933
    %v1032 = vadd.f32 %v1030, %v1025
    %v1033 = vld [vmem:[%s6] sm:$0x1]
    %v1035 = vperm.slane %v1033, 0
    %v1037 = vadd.f32 %v1031, %v1035
    %v1038 = vadd.f32 %v1032, %v1035
    %v1039 = vld [vmem:[%s0] sm:$0xff]
    %v1040 = vld [vmem:[%s0 + $0x8] sm:$0xff]
    %v1041 = vadd.f32 %v1037, %v1039
    %v1042 = vadd.f32 %v1038, %v1040
    %v1043 = vsel %vm105, %v1041, 0.0
    %1044 = vadd.xlane.f32.xlu0 %v1043
    %v1045 = vpop.xlane.xlu0 %1044
    %v1046 = vsel %vm105, %v1042, 0.0
    %1047 = vadd.xlane.f32.xlu0 %v1046
    %v1048 = vpop.xlane.xlu0 %1047
    %v1049 = vrcp.pop 32.0
    %v1050 = vmul.f32 32.0, %v1049
    %v1051 = vsub.f32 1.0, %v1050
    %v1052 = vmul.f32 %v1049, %v1051
    %v1053 = vadd.f32 %v1049, %v1052
    %vm1054 = vweird.f32 %v1049
    %v1055 = vsel %vm1054, %v1049, %v1053
    %v1056 = vmul.f32 %v1045, %v1055
    %v1057 = vmul.f32 %v1048, %v1055
    %v1058 = vsub.f32 %v1041, %v1056
    %v1059 = vsub.f32 %v1042, %v1057
    %v1060 = vmul.f32 %v1058, %v1058
    %v1061 = vmul.f32 %v1059, %v1059
    %v1062 = vsel %vm105, %v1060, 0.0
    %1063 = vadd.xlane.f32.xlu0 %v1062
    %v1064 = vpop.xlane.xlu0 %1063
    %v1065 = vsel %vm105, %v1061, 0.0
    %1066 = vadd.xlane.f32.xlu0 %v1065
    %v1067 = vpop.xlane.xlu0 %1066
    %v1068 = vmul.f32 %v1064, %v1055
    %v1069 = vmul.f32 %v1067, %v1055
    %v1070 = vadd.f32 %v1068, 1e-12
    %v1071 = vadd.f32 %v1069, 1e-12
    %v1072 = vrsqrt.pop %v1070
    %v1073 = vmul.f32 %v1072, %v1070
    %v1074 = vmul.f32 %v1073, %v1072
    %v1075 = vmul.f32 0.5, %v1074
    %v1076 = vsub.f32 1.5, %v1075
    %v1077 = vmul.f32 %v1072, %v1076
    %vm1078 = vweird.f32 %v1070
    %vm1079 = vweird.f32 %v1072
    %vm1080 = vmor %vm1078, %vm1079
    %v1081 = vsel %vm1080, %v1072, %v1077
    %v1082 = vrsqrt.pop %v1071
    %v1083 = vmul.f32 %v1082, %v1071
    %v1084 = vmul.f32 %v1083, %v1082
    %v1085 = vmul.f32 0.5, %v1084
    %v1086 = vsub.f32 1.5, %v1085
    %v1087 = vmul.f32 %v1082, %v1086
    %vm1088 = vweird.f32 %v1071
    %vm1089 = vweird.f32 %v1082
    %vm1090 = vmor %vm1088, %vm1089
    %v1091 = vsel %vm1090, %v1082, %v1087
    %v1092 = vmul.f32 %v1058, %v1081
    %v1093 = vmul.f32 %v1059, %v1091
    %v1094 = vld [vmem:[%s7] sm:$0x1]
    %v1096 = vperm.slane %v1094, 0
    %v1098 = vmul.f32 %v1092, %v1096
    %v1099 = vmul.f32 %v1093, %v1096
    %v1100 = vld [vmem:[%s8] sm:$0x1]
    %v1102 = vperm.slane %v1100, 0
    %v1104 = vadd.f32 %v1098, %v1102
    %v1105 = vadd.f32 %v1099, %v1102
    %1106 = vst.msk [vmem:[#allocation2] sm:$0xff] %vm105, %v1104
    %1107 = vst.msk [vmem:[#allocation2 + $0x8] sm:$0xff] %vm105, %v1105
    // Predicated region
    $region38: #{tpu_custom_call.1} parent=1 // pred_check
      _
    $region39: #{tpu_custom_call.1} parent=1 // pred_check_branch
      %1109 = sbr.rel (0) target = $region41
    $region40: #{tpu_custom_call.1} parent=1 // pred_region
      %1111 = vsyncadd [#allocation3], 0
      %s1112 = sshll.u32 [#allocation2], 4
      %s1113 = int_to_ptr.vmem [resolvable:$true] %s1112
      %s1114 = sshll.u32 %s9, 4
      %s1115 = int_to_ptr.hbm [resolvable:$true] %s1114
      %1120 = dma.vmem_to_hbm [thread:$0]  %s1113, 256, %s1115, [#allocation3], 128, 128, 8
    $region41: #{tpu_custom_call.1} parent=1 // pred_fallthru
      _
    // Predicated region
    $region42: #{tpu_custom_call.1} parent=1 // pred_check
      _
    $region43: #{tpu_custom_call.1} parent=1 // pred_check_branch
      %1122 = sbr.rel (0) target = $region45
    $region44: #{tpu_custom_call.1} parent=1 // pred_region
      %1124 = dma.done [#allocation3], 256
    $region45: #{tpu_custom_call.1} parent=1 // pred_fallthru
      _
    %1125 = vsyncpa [#allocation3], 1

</llo_original>
